<compile_context>
chip_gen: v7x
topology: tpu7x:2x2x1
jax: 0.10.0
libtpu: 0.0.40
codegen_flags: <defaults>
</compile_context>

<pallas_src>
import functools

import jax
import jax.numpy as jnp
from jax import lax
from jax.experimental import pallas as pl
from jax.experimental.pallas import tpu as pltpu


def _linear_attention_kernel(x_ref, mask_ref, w_qkv_ref, w_out_ref, b_out_ref,
                             g2s_ref, o_ref, *, compute_dtype):
    f32 = jnp.float32
    hidden = w_out_ref.shape[1]

    x = x_ref[...].astype(f32)                                     # (C, N) one batch elem
    mask = mask_ref[...]                                           # (hidden, hidden) 0/1 f32
    mask_c = mask.astype(compute_dtype)

    # --- RMSNorm 1 (g1 * sqrt(C) gain folded into w_qkv on the host) ---
    # F.normalize: x / max(||x||, 1e-12)  ==  x * rsqrt(max(sum(x^2), 1e-24))
    inv_n = lax.rsqrt(jnp.maximum(jnp.sum(x * x, axis=0, keepdims=True), 1e-24))
    xn = (x * inv_n).astype(compute_dtype)

    # --- to_qkv: 1x1 conv == channel matmul, one MXU push ---
    qkv = jnp.dot(w_qkv_ref[...], xn, preferred_element_type=f32)  # (3*hidden, N)
    q = qkv[0 * hidden:1 * hidden]
    k = qkv[1 * hidden:2 * hidden]
    v = qkv[2 * hidden:3 * hidden]

    # --- q softmax over the D rows of each head (per column) ---
    # Subtracting the global per-column max is softmax-invariant (same constant
    # for every row of a head); per-head group sums come from ONE block-diag matmul.
    eq = jnp.exp(q - jnp.max(q, axis=0, keepdims=True))            # (hidden, N)
    qden = jnp.dot(mask_c, eq.astype(compute_dtype), preferred_element_type=f32)
    qn = eq * pl.reciprocal(qden, approx=True)
    # (dim_head**-0.5 scale on q is folded into w_out on the host)

    # --- k softmax over the spatial axis (per row) ---
    ek = jnp.exp(k - jnp.max(k, axis=1, keepdims=True))
    kn = ek * pl.reciprocal(jnp.sum(ek, axis=1, keepdims=True), approx=True)

    # --- context: full K.V^T gram in one MXU push, masked to per-head D x D blocks ---
    kv = lax.dot_general(kn.astype(compute_dtype), v.astype(compute_dtype),
                         (((1,), (1,)), ((), ())),
                         preferred_element_type=f32)               # (hidden, hidden): kv[d,e]
    ctx = kv * mask                                                # block-diagonal context

    # --- fold output projection into the context: M[c,d] = sum_e W_out[c,e] * ctx[d,e] ---
    m = lax.dot_general(w_out_ref[...], ctx.astype(compute_dtype),
                        (((1,), (1,)), ((), ())),
                        preferred_element_type=f32)                # (C, hidden)

    # --- y = M @ qn == W_out @ (attention output); then bias + RMSNorm 2 ---
    y = jnp.dot(m.astype(compute_dtype), qn.astype(compute_dtype),
                preferred_element_type=f32)                        # (C, N)
    y = y + b_out_ref[...]                                         # (C, 1) broadcast
    inv_n2 = lax.rsqrt(jnp.maximum(jnp.sum(y * y, axis=0, keepdims=True), 1e-24))
    o_ref[...] = (y * inv_n2 * g2s_ref[...]).astype(o_ref.dtype)   # one lane-dense store


def linear_attention(x_nchw, params, heads=4, dim_head=4, *,
                     compute_dtype=jnp.float32, vmem_limit_bytes=None):
    """Pallas TPU forward pass of the PyTorch LinearAttention module."""
    B, C, H, W = x_nchw.shape
    N = H * W
    hidden = heads * dim_head
    scale = dim_head ** -0.5

    # ---- host-side constant folding (one-time weight preprocessing) ----
    g1 = params["g1"].reshape(1, C).astype(jnp.float32)
    w_qkv = params["w_qkv"].reshape(3 * hidden, C).astype(jnp.float32)
    w_qkv = (w_qkv * (g1 * (C ** 0.5))).astype(compute_dtype)        # fold RMSNorm1 gain
    w_out = (params["w_out"].reshape(C, hidden).astype(jnp.float32)
             * scale).astype(compute_dtype)                          # fold q scale
    b_out = params["b_out"].reshape(C, 1).astype(jnp.float32)
    g2s = params["g2"].reshape(C, 1).astype(jnp.float32) * (C ** 0.5)
    head_id = jnp.arange(hidden) // dim_head
    mask = (head_id[:, None] == head_id[None, :]).astype(jnp.float32)  # block-diag ones

    # ---- natural layout: NCHW -> (B, C, N); free reshape, no host transpose ----
    x3 = x_nchw.reshape(B, C, N)

    kernel = functools.partial(_linear_attention_kernel, compute_dtype=compute_dtype)

    cp_kwargs = dict(dimension_semantics=("parallel",))
    if vmem_limit_bytes is not None:
        cp_kwargs["vmem_limit_bytes"] = vmem_limit_bytes

    out3 = pl.pallas_call(
        kernel,
        out_shape=jax.ShapeDtypeStruct((B, C, N), x_nchw.dtype),
        grid_spec=pltpu.PrefetchScalarGridSpec(
            num_scalar_prefetch=0,
            grid=(B,),
            in_specs=[
                pl.BlockSpec((None, C, N), lambda b: (b, 0, 0)),    # x: one batch / step
                pl.BlockSpec((hidden, hidden), lambda b: (0, 0)),   # head mask (resident)
                pl.BlockSpec((3 * hidden, C), lambda b: (0, 0)),    # folded w_qkv
                pl.BlockSpec((C, hidden), lambda b: (0, 0)),        # folded w_out
                pl.BlockSpec((C, 1), lambda b: (0, 0)),             # b_out
                pl.BlockSpec((C, 1), lambda b: (0, 0)),             # g2 * sqrt(C)
            ],
            out_specs=pl.BlockSpec((None, C, N), lambda b: (b, 0, 0)),
        ),
        compiler_params=pltpu.CompilerParams(**cp_kwargs),
    )(x3, mask, w_qkv, w_out, b_out, g2s)

    return out3.reshape(B, C, H, W)


def reference(x, params, heads=4, dim_head=4):
    """Pure-JAX port of the PyTorch forward, for correctness checking."""
    B, C, H, W = x.shape
    hidden = heads * dim_head
    g1 = params["g1"].reshape(1, C, 1, 1)
    g2 = params["g2"].reshape(1, C, 1, 1)

    nrm = jnp.sqrt(jnp.sum(x * x, axis=1, keepdims=True))
    xn = x / jnp.maximum(nrm, 1e-12) * g1 * (C ** 0.5)

    qkv = jnp.einsum('oc,bchw->bohw', params["w_qkv"], xn)
    q, k, v = jnp.split(qkv, 3, axis=1)
    rearr = lambda t: t.reshape(B, heads, dim_head, H * W)
    q, k, v = map(rearr, (q, k, v))
    q = jax.nn.softmax(q, axis=-2) * (dim_head ** -0.5)
    k = jax.nn.softmax(k, axis=-1)
    context = jnp.einsum('bhdn,bhen->bhde', k, v)
    out = jnp.einsum('bhde,bhdn->bhen', context, q)
    out = out.reshape(B, hidden, H, W)

    y = jnp.einsum('oc,bchw->bohw', params["w_out"], out)
    y = y + params["b_out"].reshape(1, C, 1, 1)
    nrm2 = jnp.sqrt(jnp.sum(y * y, axis=1, keepdims=True))
    return y / jnp.maximum(nrm2, 1e-12) * g2 * (C ** 0.5)


if __name__ == "__main__":
    B, C, H, W = 2, 4, 16, 16
    heads, dim_head = 4, 4
    hidden = heads * dim_head

    key = jax.random.PRNGKey(0)
    k1, k2, k3, k4 = jax.random.split(key, 4)
    x = jax.random.normal(k1, (B, C, H, W), jnp.float32)

    params = {
        "g1": jnp.ones((C,), jnp.float32),
        "w_qkv": 0.2 * jax.random.normal(k2, (3 * hidden, C), jnp.float32),
        "w_out": 0.2 * jax.random.normal(k3, (C, hidden), jnp.float32),
        "b_out": 0.1 * jax.random.normal(k4, (C,), jnp.float32),
        "g2": jnp.ones((C,), jnp.float32),
    }

    ref = reference(x, params, heads=heads, dim_head=dim_head)

    # f32-operand run (default); tolerance covers the approx reciprocals on the EUP.
    out = linear_attention(x, params, heads=heads, dim_head=dim_head)
    out = jax.block_until_ready(out)
    err = float(jnp.max(jnp.abs(out - ref)))
    assert jnp.allclose(out, ref, rtol=5e-3, atol=5e-3), f"f32 max abs err {err}"

    # bf16 MXU-operand variant (recommended on v6e/v7x), f32 accumulation.
    out_bf16 = linear_attention(x, params, heads=heads, dim_head=dim_head,
                                compute_dtype=jnp.bfloat16)
    out_bf16 = jax.block_until_ready(out_bf16)
    err_bf16 = float(jnp.max(jnp.abs(out_bf16 - ref)))
    assert jnp.isfinite(err_bf16) and err_bf16 < 0.25, f"bf16 max abs err {err_bf16}"

    print("KERNEL_OK")
</pallas_src>

<mosaic_0001>
module attributes {stable_mosaic.version = 11 : i64} {
  func.func @_linear_attention_kernel(%arg0: i32, %arg1: memref<1x4x256xf32, #tpu.memory_space<vmem>>, %arg2: memref<16x16xf32, #tpu.memory_space<vmem>>, %arg3: memref<48x4xf32, #tpu.memory_space<vmem>>, %arg4: memref<4x16xf32, #tpu.memory_space<vmem>>, %arg5: memref<4x1xf32, #tpu.memory_space<vmem>>, %arg6: memref<4x1xf32, #tpu.memory_space<vmem>>, %arg7: memref<1x4x256xf32, #tpu.memory_space<vmem>>) attributes {dimension_semantics = [#tpu.dimension_semantics<parallel>], iteration_bounds = array<i64: 2>, scalar_prefetch = 0 : i64, scratch_operands = 0 : i64, tpu.core_type = #tpu.core_type<tc>, window_params = [{transform_indices = @transform_0, window_bounds = array<i64: 1, 4, 256>}, {pipeline_mode = #tpu.pipeline_mode<synchronous>, transform_indices = @transform_1, window_bounds = array<i64: 16, 16>}, {pipeline_mode = #tpu.pipeline_mode<synchronous>, transform_indices = @transform_2, window_bounds = array<i64: 48, 4>}, {pipeline_mode = #tpu.pipeline_mode<synchronous>, transform_indices = @transform_3, window_bounds = array<i64: 4, 16>}, {pipeline_mode = #tpu.pipeline_mode<synchronous>, transform_indices = @transform_4, window_bounds = array<i64: 4, 1>}, {pipeline_mode = #tpu.pipeline_mode<synchronous>, transform_indices = @transform_5, window_bounds = array<i64: 4, 1>}, {transform_indices = @transform_6, window_bounds = array<i64: 1, 4, 256>}]} {
    %c0 = arith.constant 0 : index
    %c0_0 = arith.constant 0 : index
    %c0_1 = arith.constant 0 : index
    %0 = vector.load %arg1[%c0, %c0_0, %c0_1] : memref<1x4x256xf32, #tpu.memory_space<vmem>>, vector<1x4x256xf32>
    %1 = vector.shape_cast %0 : vector<1x4x256xf32> to vector<4x256xf32>
    %c0_2 = arith.constant 0 : index
    %c0_3 = arith.constant 0 : index
    %2 = vector.load %arg2[%c0_2, %c0_3] : memref<16x16xf32, #tpu.memory_space<vmem>>, vector<16x16xf32>
    %3 = arith.mulf %1, %1 : vector<4x256xf32>
    %cst = arith.constant dense<0.000000e+00> : vector<256xf32>
    %4 = vector.multi_reduction <add>, %3, %cst [0] : vector<4x256xf32> to vector<256xf32>
    %5 = vector.shape_cast %4 : vector<256xf32> to vector<1x256xf32>
    %cst_4 = arith.constant 1.000000e-24 : f32
    %6 = vector.broadcast %cst_4 : f32 to vector<1x256xf32>
    %7 = arith.maximumf %5, %6 : vector<1x256xf32>
    %8 = math.rsqrt %7 : vector<1x256xf32>
    %9 = vector.broadcast %8 : vector<1x256xf32> to vector<4x256xf32>
    %10 = arith.mulf %1, %9 : vector<4x256xf32>
    %c0_5 = arith.constant 0 : index
    %c0_6 = arith.constant 0 : index
    %11 = vector.load %arg3[%c0_5, %c0_6] : memref<48x4xf32, #tpu.memory_space<vmem>>, vector<48x4xf32>
    %cst_7 = arith.constant dense<0.000000e+00> : vector<48x256xf32>
    %12 = tpu.matmul %11, %10, %cst_7 {dimension_numbers = #tpu.dot_dimension_numbers<[1], [0], [0], [1], [0, 0, 1, 1], [], []>} : vector<48x4xf32>, vector<4x256xf32>, vector<48x256xf32> -> vector<48x256xf32>
    %13 = vector.extract_strided_slice %12 {offsets = [0, 0], sizes = [16, 256], strides = [1, 1]} : vector<48x256xf32> to vector<16x256xf32>
    %14 = vector.extract_strided_slice %12 {offsets = [16, 0], sizes = [16, 256], strides = [1, 1]} : vector<48x256xf32> to vector<16x256xf32>
    %15 = vector.extract_strided_slice %12 {offsets = [32, 0], sizes = [16, 256], strides = [1, 1]} : vector<48x256xf32> to vector<16x256xf32>
    %cst_8 = arith.constant dense<0xFF800000> : vector<256xf32>
    %16 = vector.multi_reduction <maximumf>, %13, %cst_8 [0] : vector<16x256xf32> to vector<256xf32>
    %17 = vector.shape_cast %16 : vector<256xf32> to vector<1x256xf32>
    %18 = vector.broadcast %17 : vector<1x256xf32> to vector<16x256xf32>
    %19 = arith.subf %13, %18 : vector<16x256xf32>
    %20 = math.exp %19 : vector<16x256xf32>
    %cst_9 = arith.constant dense<0.000000e+00> : vector<16x256xf32>
    %21 = tpu.matmul %2, %20, %cst_9 {dimension_numbers = #tpu.dot_dimension_numbers<[1], [0], [0], [1], [0, 0, 1, 1], [], []>} : vector<16x16xf32>, vector<16x256xf32>, vector<16x256xf32> -> vector<16x256xf32>
    %22 = tpu.reciprocal %21 {approx = true} : vector<16x256xf32> -> vector<16x256xf32>
    %23 = arith.mulf %20, %22 : vector<16x256xf32>
    %cst_10 = arith.constant dense<0xFF800000> : vector<16xf32>
    %24 = vector.multi_reduction <maximumf>, %14, %cst_10 [1] : vector<16x256xf32> to vector<16xf32>
    %25 = vector.shape_cast %24 : vector<16xf32> to vector<16x1xf32>
    %26 = vector.broadcast %25 : vector<16x1xf32> to vector<16x256xf32>
    %27 = arith.subf %14, %26 : vector<16x256xf32>
    %28 = math.exp %27 : vector<16x256xf32>
    %cst_11 = arith.constant dense<0.000000e+00> : vector<16xf32>
    %29 = vector.multi_reduction <add>, %28, %cst_11 [1] : vector<16x256xf32> to vector<16xf32>
    %30 = vector.shape_cast %29 : vector<16xf32> to vector<16x1xf32>
    %31 = tpu.reciprocal %30 {approx = true} : vector<16x1xf32> -> vector<16x1xf32>
    %32 = vector.broadcast %31 : vector<16x1xf32> to vector<16x256xf32>
    %33 = arith.mulf %28, %32 : vector<16x256xf32>
    %cst_12 = arith.constant dense<0.000000e+00> : vector<16x16xf32>
    %34 = tpu.matmul %33, %15, %cst_12 {dimension_numbers = #tpu.dot_dimension_numbers<[1], [1], [0], [0], [0, 0, 1, 0], [], []>} : vector<16x256xf32>, vector<16x256xf32>, vector<16x16xf32> -> vector<16x16xf32>
    %35 = arith.mulf %34, %2 : vector<16x16xf32>
    %c0_13 = arith.constant 0 : index
    %c0_14 = arith.constant 0 : index
    %36 = vector.load %arg4[%c0_13, %c0_14] : memref<4x16xf32, #tpu.memory_space<vmem>>, vector<4x16xf32>
    %cst_15 = arith.constant dense<0.000000e+00> : vector<4x16xf32>
    %37 = tpu.matmul %36, %35, %cst_15 {dimension_numbers = #tpu.dot_dimension_numbers<[1], [1], [0], [0], [0, 0, 1, 0], [], []>} : vector<4x16xf32>, vector<16x16xf32>, vector<4x16xf32> -> vector<4x16xf32>
    %cst_16 = arith.constant dense<0.000000e+00> : vector<4x256xf32>
    %38 = tpu.matmul %37, %23, %cst_16 {dimension_numbers = #tpu.dot_dimension_numbers<[1], [0], [0], [1], [0, 0, 1, 1], [], []>} : vector<4x16xf32>, vector<16x256xf32>, vector<4x256xf32> -> vector<4x256xf32>
    %c0_17 = arith.constant 0 : index
    %c0_18 = arith.constant 0 : index
    %39 = vector.load %arg5[%c0_17, %c0_18] : memref<4x1xf32, #tpu.memory_space<vmem>>, vector<4x1xf32>
    %40 = vector.broadcast %39 : vector<4x1xf32> to vector<4x256xf32>
    %41 = arith.addf %38, %40 : vector<4x256xf32>
    %42 = arith.mulf %41, %41 : vector<4x256xf32>
    %cst_19 = arith.constant dense<0.000000e+00> : vector<256xf32>
    %43 = vector.multi_reduction <add>, %42, %cst_19 [0] : vector<4x256xf32> to vector<256xf32>
    %44 = vector.shape_cast %43 : vector<256xf32> to vector<1x256xf32>
    %cst_20 = arith.constant 1.000000e-24 : f32
    %45 = vector.broadcast %cst_20 : f32 to vector<1x256xf32>
    %46 = arith.maximumf %44, %45 : vector<1x256xf32>
    %47 = math.rsqrt %46 : vector<1x256xf32>
    %48 = vector.broadcast %47 : vector<1x256xf32> to vector<4x256xf32>
    %49 = arith.mulf %41, %48 : vector<4x256xf32>
    %c0_21 = arith.constant 0 : index
    %c0_22 = arith.constant 0 : index
    %50 = vector.load %arg6[%c0_21, %c0_22] : memref<4x1xf32, #tpu.memory_space<vmem>>, vector<4x1xf32>
    %51 = vector.broadcast %50 : vector<4x1xf32> to vector<4x256xf32>
    %52 = arith.mulf %49, %51 : vector<4x256xf32>
    %c0_23 = arith.constant 0 : index
    %c0_24 = arith.constant 0 : index
    %c0_25 = arith.constant 0 : index
    %53 = vector.load %arg7[%c0_23, %c0_24, %c0_25] : memref<1x4x256xf32, #tpu.memory_space<vmem>>, vector<1x4x256xf32>
    %54 = vector.shape_cast %53 : vector<1x4x256xf32> to vector<4x256xf32>
    %55 = vector.shape_cast %52 : vector<4x256xf32> to vector<1x4x256xf32>
    tpu.vector_store %arg7[%c0_23, %c0_24, %c0_25], %55 {strides = array<i32>} : memref<1x4x256xf32, #tpu.memory_space<vmem>>, vector<1x4x256xf32>,
    return
  }
  func.func @transform_0(%arg0: i32) -> (i32, i32, i32) {
    %c0_i32 = arith.constant 0 : i32
    %c0_i32_0 = arith.constant 0 : i32
    %c0_i32_1 = arith.constant 0 : i32
    return %arg0, %c0_i32, %c0_i32_0 : i32, i32, i32
  }
  func.func @transform_1(%arg0: i32) -> (i32, i32) {
    %c0_i32 = arith.constant 0 : i32
    %c0_i32_0 = arith.constant 0 : i32
    %c0_i32_1 = arith.constant 0 : i32
    return %c0_i32, %c0_i32_0 : i32, i32
  }
  func.func @transform_2(%arg0: i32) -> (i32, i32) {
    %c0_i32 = arith.constant 0 : i32
    %c0_i32_0 = arith.constant 0 : i32
    %c0_i32_1 = arith.constant 0 : i32
    return %c0_i32, %c0_i32_0 : i32, i32
  }
  func.func @transform_3(%arg0: i32) -> (i32, i32) {
    %c0_i32 = arith.constant 0 : i32
    %c0_i32_0 = arith.constant 0 : i32
    %c0_i32_1 = arith.constant 0 : i32
    return %c0_i32, %c0_i32_0 : i32, i32
  }
  func.func @transform_4(%arg0: i32) -> (i32, i32) {
    %c0_i32 = arith.constant 0 : i32
    %c0_i32_0 = arith.constant 0 : i32
    %c0_i32_1 = arith.constant 0 : i32
    return %c0_i32, %c0_i32_0 : i32, i32
  }
  func.func @transform_5(%arg0: i32) -> (i32, i32) {
    %c0_i32 = arith.constant 0 : i32
    %c0_i32_0 = arith.constant 0 : i32
    %c0_i32_1 = arith.constant 0 : i32
    return %c0_i32, %c0_i32_0 : i32, i32
  }
  func.func @transform_6(%arg0: i32) -> (i32, i32, i32) {
    %c0_i32 = arith.constant 0 : i32
    %c0_i32_0 = arith.constant 0 : i32
    %c0_i32_1 = arith.constant 0 : i32
    return %arg0, %c0_i32, %c0_i32_0 : i32, i32, i32
  }
}

</mosaic_0001>

<llo_original>
// kernel: tpu_custom_call.1
$region0: #{tpu_custom_call.1}
  #allocation0 [shape = 'u32[]', space=smem, size = 0x4, offset = 0x4, fixed_abs, tag = 'smem constant byte address 0x4 - core index']
  #allocation1 [shape = 'u32[144,128]{1,0:T(1,128)}', space=vmem, size = 0x12000, scoped, tag = 'internal scratch']
  %s0 = inlined_call_operand.vmem [shape: f32[2,4,256], index: 0, kind: input, shape index: {}]
  %s1 = inlined_call_operand.vmem [shape: f32[16,16], index: 1, kind: input, shape index: {}]
  %s2 = inlined_call_operand.vmem [shape: f32[48,4], index: 2, kind: input, shape index: {}]
  %s3 = inlined_call_operand.vmem [shape: f32[4,16], index: 3, kind: input, shape index: {}]
  %s4 = inlined_call_operand.vmem [shape: f32[4,1], index: 4, kind: input, shape index: {}]
  %s5 = inlined_call_operand.vmem [shape: f32[4,1], index: 5, kind: input, shape index: {}]
  %s6 = inlined_call_operand.hbm [shape: f32[2,4,256], index: 6, kind: output, shape index: {}]
  %s7 = sld [smem:[#allocation0]]
  $region57: #{tpu_custom_call.1} parent=0
    _
  %s9 = ssub.s32 1, %s7
  %s10 = scalar_select 0, %s9, %s7
  $region1: #{tpu_custom_call.1} parent=0
    #allocation2 [shape = 'u8[8192]{0}', space=vmem, size = 0x2000, scoped, tag = 'output window, operand 0']
    #allocation3 [shape = 's32[2]{0}', space=sflag, size = 0x8, scoped, tag = 'scoped memory for tpu_custom_call.1']
    %11 = vsyncpa [#allocation3], 0
    %s12 = scalar_lea.sflag [#allocation3], 1
    %13 = vsyncpa %s12, 0
    loop: start=0, step=1, limit=4
    $region2: #{tpu_custom_call.1} parent=1 // loop_pre_header
      _
    $region3: #{tpu_custom_call.1} parent=1 // loop_header
      %s15 = sphi 0, %s19
      %p16 = scmp.ge.s32.totalorder %s15, 4
      %s25 = sphi 0, %s27
      %s28 = sphi 0, %s25
      %s29 = sphi 0, %s28
      %s45 = sphi 0, %s29
      %s49 = sphi 0, %s49
      %s51 = sphi 0, %s49
      %s52 = sphi 0, %s51
      %s66 = sphi 0, %s52
      %s70 = sphi 0, %s70
      %s72 = sphi 0, %s70
      %s73 = sphi 0, %s72
      %s87 = sphi 0, %s73
      %s91 = sphi 0, %s91
      %s93 = sphi 0, %s91
      %s94 = sphi 0, %s93
      %s108 = sphi 0, %s94
      %s112 = sphi 0, %s112
      %s114 = sphi 0, %s112
      %s115 = sphi 0, %s114
      %s129 = sphi 0, %s115
      %s133 = sphi 0, %s133
      %s135 = sphi 0, %s133
      %s136 = sphi 0, %s135
      %s150 = sphi 0, %s136
      %s156 = sphi 0, %s158
      %s159 = sphi 0, %s156
      %s160 = sphi 0, %s159
      %s176 = sphi 0, %s160
    $region4: #{tpu_custom_call.1} parent=1 // loop_header_branch
      %18 = sbr.rel (%p16) target = $region8
    $region5: #{tpu_custom_call.1} parent=1 // loop_body
      %s20 = ssub.s32 %s15, 1
      %s21 = ssub.s32 %s15, 2
      %s22 = sadd.s32 %s15, 1
      %s23 = ssub.s32 %s15, %s22
      %p24 = scmp.eq.s32.totalorder %s23, 0
      %s26 = sadd.s32 %s25, 1
      %s27 = scalar_select %p24, %s25, %s26
      %p30 = pneg %p24
      %p31 = scmp.eq.s32.totalorder %s15, 1
      %p32 = por %p30, %p31
      %p33 = scmp.ne.s32.totalorder %s25, %s28
      %p34 = scmp.eq.s32.totalorder %s15, 0
      %p35 = por %p33, %p34
      %p36 = scmp.ne.s32.totalorder %s25, %s28
      %p37 = scmp.eq.s32.totalorder %s20, 1
      %p38 = por %p36, %p37
      %p39 = scmp.ne.s32.totalorder %s28, %s29
      %p40 = scmp.eq.s32.totalorder %s20, 0
      %p41 = por %p39, %p40
      %p42 = scmp.ne.s32.totalorder %s28, %s29
      %p43 = scmp.eq.s32.totalorder %s21, 1
      %p44 = por %p42, %p43
      %p46 = scmp.ne.s32.totalorder %s29, %s45
      %p47 = scmp.eq.s32.totalorder %s21, 0
      %p48 = por %p46, %p47
      %s50 = sadd.s32 %s49, 1
      %p53 = scmp.eq.s32.totalorder %s15, 1
      %p54 = scmp.ne.s32.totalorder %s49, %s51
      %p55 = scmp.eq.s32.totalorder %s15, 0
      %p56 = por %p54, %p55
      %p57 = scmp.ne.s32.totalorder %s49, %s51
      %p58 = scmp.eq.s32.totalorder %s20, 1
      %p59 = por %p57, %p58
      %p60 = scmp.ne.s32.totalorder %s51, %s52
      %p61 = scmp.eq.s32.totalorder %s20, 0
      %p62 = por %p60, %p61
      %p63 = scmp.ne.s32.totalorder %s51, %s52
      %p64 = scmp.eq.s32.totalorder %s21, 1
      %p65 = por %p63, %p64
      %p67 = scmp.ne.s32.totalorder %s52, %s66
      %p68 = scmp.eq.s32.totalorder %s21, 0
      %p69 = por %p67, %p68
      %s71 = sadd.s32 %s70, 1
      %p74 = scmp.eq.s32.totalorder %s15, 1
      %p75 = scmp.ne.s32.totalorder %s70, %s72
      %p76 = scmp.eq.s32.totalorder %s15, 0
      %p77 = por %p75, %p76
      %p78 = scmp.ne.s32.totalorder %s70, %s72
      %p79 = scmp.eq.s32.totalorder %s20, 1
      %p80 = por %p78, %p79
      %p81 = scmp.ne.s32.totalorder %s72, %s73
      %p82 = scmp.eq.s32.totalorder %s20, 0
      %p83 = por %p81, %p82
      %p84 = scmp.ne.s32.totalorder %s72, %s73
      %p85 = scmp.eq.s32.totalorder %s21, 1
      %p86 = por %p84, %p85
      %p88 = scmp.ne.s32.totalorder %s73, %s87
      %p89 = scmp.eq.s32.totalorder %s21, 0
      %p90 = por %p88, %p89
      %s92 = sadd.s32 %s91, 1
      %p95 = scmp.eq.s32.totalorder %s15, 1
      %p96 = scmp.ne.s32.totalorder %s91, %s93
      %p97 = scmp.eq.s32.totalorder %s15, 0
      %p98 = por %p96, %p97
      %p99 = scmp.ne.s32.totalorder %s91, %s93
      %p100 = scmp.eq.s32.totalorder %s20, 1
      %p101 = por %p99, %p100
      %p102 = scmp.ne.s32.totalorder %s93, %s94
      %p103 = scmp.eq.s32.totalorder %s20, 0
      %p104 = por %p102, %p103
      %p105 = scmp.ne.s32.totalorder %s93, %s94
      %p106 = scmp.eq.s32.totalorder %s21, 1
      %p107 = por %p105, %p106
      %p109 = scmp.ne.s32.totalorder %s94, %s108
      %p110 = scmp.eq.s32.totalorder %s21, 0
      %p111 = por %p109, %p110
      %s113 = sadd.s32 %s112, 1
      %p116 = scmp.eq.s32.totalorder %s15, 1
      %p117 = scmp.ne.s32.totalorder %s112, %s114
      %p118 = scmp.eq.s32.totalorder %s15, 0
      %p119 = por %p117, %p118
      %p120 = scmp.ne.s32.totalorder %s112, %s114
      %p121 = scmp.eq.s32.totalorder %s20, 1
      %p122 = por %p120, %p121
      %p123 = scmp.ne.s32.totalorder %s114, %s115
      %p124 = scmp.eq.s32.totalorder %s20, 0
      %p125 = por %p123, %p124
      %p126 = scmp.ne.s32.totalorder %s114, %s115
      %p127 = scmp.eq.s32.totalorder %s21, 1
      %p128 = por %p126, %p127
      %p130 = scmp.ne.s32.totalorder %s115, %s129
      %p131 = scmp.eq.s32.totalorder %s21, 0
      %p132 = por %p130, %p131
      %s134 = sadd.s32 %s133, 1
      %p137 = scmp.eq.s32.totalorder %s15, 1
      %p138 = scmp.ne.s32.totalorder %s133, %s135
      %p139 = scmp.eq.s32.totalorder %s15, 0
      %p140 = por %p138, %p139
      %p141 = scmp.ne.s32.totalorder %s133, %s135
      %p142 = scmp.eq.s32.totalorder %s20, 1
      %p143 = por %p141, %p142
      %p144 = scmp.ne.s32.totalorder %s135, %s136
      %p145 = scmp.eq.s32.totalorder %s20, 0
      %p146 = por %p144, %p145
      %p147 = scmp.ne.s32.totalorder %s135, %s136
      %p148 = scmp.eq.s32.totalorder %s21, 1
      %p149 = por %p147, %p148
      %p151 = scmp.ne.s32.totalorder %s136, %s150
      %p152 = scmp.eq.s32.totalorder %s21, 0
      %p153 = por %p151, %p152
      %s154 = ssub.s32 %s15, %s22
      %p155 = scmp.eq.s32.totalorder %s154, 0
      %s157 = sadd.s32 %s156, 1
      %s158 = scalar_select %p155, %s156, %s157
      %p161 = pneg %p155
      %p162 = scmp.eq.s32.totalorder %s15, 1
      %p163 = por %p161, %p162
      %p164 = scmp.ne.s32.totalorder %s156, %s159
      %p165 = scmp.eq.s32.totalorder %s15, 0
      %p166 = por %p164, %p165
      %p167 = scmp.ne.s32.totalorder %s156, %s159
      %p168 = scmp.eq.s32.totalorder %s20, 1
      %p169 = por %p167, %p168
      %p170 = scmp.ne.s32.totalorder %s159, %s160
      %p171 = scmp.eq.s32.totalorder %s20, 0
      %p172 = por %p170, %p171
      %p173 = scmp.ne.s32.totalorder %s159, %s160
      %p174 = scmp.eq.s32.totalorder %s21, 1
      %p175 = por %p173, %p174
      %p177 = scmp.ne.s32.totalorder %s160, %s176
      %p178 = scmp.eq.s32.totalorder %s21, 0
      %p179 = por %p177, %p178
      %p180 = scmp.le.s32.totalorder 1, %s15
      %p181 = scmp.lt.s32.totalorder %s15, 3
      %p182 = pnand %p180, %p181
      %p183 = pneg %p182
      // Predicated region
      $region9: #{tpu_custom_call.1} parent=5 // pred_check
        _
      $region10: #{tpu_custom_call.1} parent=5 // pred_check_branch
        %185 = sbr.rel (%p182) target = $region12
      $region11: #{tpu_custom_call.1} parent=5 // pred_region
        %s186 = ssub.s32 %s15, 1
        // Predicated region
        $region13: #{tpu_custom_call.1} parent=11 // pred_check
          %p187 = pneg %p62
        $region14: #{tpu_custom_call.1} parent=11 // pred_check_branch
          %189 = sbr.rel (%p187) target = $region16
        $region15: #{tpu_custom_call.1} parent=11 // pred_region
          _
        $region16: #{tpu_custom_call.1} parent=11 // pred_fallthru
          _
        // Predicated region
        $region17: #{tpu_custom_call.1} parent=11 // pred_check
          %p190 = pneg %p83
        $region18: #{tpu_custom_call.1} parent=11 // pred_check_branch
          %192 = sbr.rel (%p190) target = $region20
        $region19: #{tpu_custom_call.1} parent=11 // pred_region
          _
        $region20: #{tpu_custom_call.1} parent=11 // pred_fallthru
          _
        // Predicated region
        $region21: #{tpu_custom_call.1} parent=11 // pred_check
          %p193 = pneg %p104
        $region22: #{tpu_custom_call.1} parent=11 // pred_check_branch
          %195 = sbr.rel (%p193) target = $region24
        $region23: #{tpu_custom_call.1} parent=11 // pred_region
          _
        $region24: #{tpu_custom_call.1} parent=11 // pred_fallthru
          _
        // Predicated region
        $region25: #{tpu_custom_call.1} parent=11 // pred_check
          %p196 = pneg %p125
        $region26: #{tpu_custom_call.1} parent=11 // pred_check_branch
          %198 = sbr.rel (%p196) target = $region28
        $region27: #{tpu_custom_call.1} parent=11 // pred_region
          _
        $region28: #{tpu_custom_call.1} parent=11 // pred_fallthru
          _
        // Predicated region
        $region29: #{tpu_custom_call.1} parent=11 // pred_check
          %p199 = pneg %p146
        $region30: #{tpu_custom_call.1} parent=11 // pred_check_branch
          %201 = sbr.rel (%p199) target = $region32
        $region31: #{tpu_custom_call.1} parent=11 // pred_region
          _
        $region32: #{tpu_custom_call.1} parent=11 // pred_fallthru
          _
      $region12: #{tpu_custom_call.1} parent=5 // pred_fallthru
        _
      %p202 = scmp.lt.s32.totalorder %s15, 2
      // Predicated region
      $region33: #{tpu_custom_call.1} parent=5 // pred_check
        %p203 = pneg %p202
      $region34: #{tpu_custom_call.1} parent=5 // pred_check_branch
        %205 = sbr.rel (%p203) target = $region36
      $region35: #{tpu_custom_call.1} parent=5 // pred_region
        // Predicated region
        $region37: #{tpu_custom_call.1} parent=35 // pred_check
          %p206 = pneg %p35
        $region38: #{tpu_custom_call.1} parent=35 // pred_check_branch
          %208 = sbr.rel (%p206) target = $region40
        $region39: #{tpu_custom_call.1} parent=35 // pred_region
          %p209 = scmp.lt.s32.totalorder %s15, 1
          %s210 = scalar_select %p209, %s15, 1
          %s211 = smul.addr %s210, 2
          %s212 = smul.addr %s211, 4
          %s213 = scalar_lea.vmem %s0, %s212
        $region40: #{tpu_custom_call.1} parent=35 // pred_fallthru
          _
      $region36: #{tpu_custom_call.1} parent=5 // pred_fallthru
        _
      %p214 = scmp.le.s32.totalorder 1, %s15
      %p215 = scmp.lt.s32.totalorder %s15, 3
      %p216 = pnand %p214, %p215
      %p217 = pneg %p216
      // Predicated region
      $region41: #{tpu_custom_call.1} parent=5 // pred_check
        _
      $region42: #{tpu_custom_call.1} parent=5 // pred_check_branch
        %219 = sbr.rel (%p216) target = $region44
      $region43: #{tpu_custom_call.1} parent=5 // pred_region
        %s220 = ssub.s32 %s15, 1
        %p221 = scmp.lt.s32.totalorder %s20, 1
        %s222 = scalar_select %p221, %s20, 1
        %s223 = smul.addr %s222, 2
        %s224 = smul.addr %s223, 4
        %s225 = scalar_lea.vmem %s0, %s224
        %p226 = pneg %p41
        %p227 = pneg %p38
        %p228 = pneg %p62
        %p229 = pneg %p59
        %p230 = pneg %p83
        %p231 = pneg %p80
        %p232 = pneg %p104
        %p233 = pneg %p101
        %p234 = pneg %p125
        %p235 = pneg %p122
        %p236 = pneg %p146
        %p237 = pneg %p143
        %p238 = pneg %p172
        %p239 = pneg %p169
        %s240 = sand.u32 %s159, 1
        %s241 = scalar_lea.sflag [#allocation3], %s240
        %s242 = sand.u32 %s159, 1
        %s243 = smul.addr %s242, 8
        %s244 = scalar_lea.vmem [#allocation2], %s243
        %p245 = scmp.lt.s32.totalorder %s20, 1
        %s246 = scalar_select %p245, %s20, 1
        %s247 = smul.addr %s246, 2
        %s248 = smul.addr %s247, 4
        %s249 = scalar_lea.vmem %s0, %s248
        %v250 = vld [vmem:[%s249] sm:$0xff]
        %v251 = vld [vmem:[%s1] sm:$0xff]
        %v252 = vld [vmem:[%s1 + $0x8] sm:$0xff]
        %v253 = vmul.f32 %v250, %v250
        %v255 = vcombine.high %v253, %v253
        %vm257 = vcmask 1043456
        %v258 = vsel %vm257, %v253, 0.0
        %v259 = vrot.slane %v258, 4
        %v260 = vadd.f32 %v258, %v259
        %v261 = vrot.slane %v260, 2
        %v262 = vadd.f32 %v260, %v261
        %v263 = vrot.slane %v262, 1
        %v264 = vadd.f32 %v262, %v263
        %v265 = vsel %vm257, %v255, 0.0
        %v266 = vrot.slane %v265, 4
        %v267 = vadd.f32 %v265, %v266
        %v268 = vrot.slane %v267, 2
        %v269 = vadd.f32 %v267, %v268
        %v270 = vrot.slane %v269, 1
        %v271 = vadd.f32 %v269, %v270
        %v272 = vmax.f32 %v264, 1e-24
        %v273 = vmax.f32 %v271, 1e-24
        %v274 = vrsqrt.pop %v272
        %v275 = vrsqrt.pop %v273
        %v278 = vcombine.low %v274, %v275
        %v280 = vmul.f32 %v250, %v278
        %v281 = vld [vmem:[%s2] sm:$0xff]
        %v282 = vld [vmem:[%s2 + $0x8] sm:$0xff]
        %v283 = vld [vmem:[%s2 + $0x10] sm:$0xff]
        %v284 = vld [vmem:[%s2 + $0x18] sm:$0xff]
        %v285 = vld [vmem:[%s2 + $0x20] sm:$0xff]
        %v286 = vld [vmem:[%s2 + $0x28] sm:$0xff]
        %v288 = vcombine.high %v280, %v280
        %vm289 = vcmask 31744
        %v291 = vsel %vm289, %v281, 0
        %v294 = vsel %vm289, %v282, 0
        %v297 = vsel %vm289, %v283, 0
        %v300 = vsel %vm289, %v284, 0
        %v303 = vsel %vm289, %v285, 0
        %v306 = vsel %vm289, %v286, 0
        %v308 = vsel %vm257, %v280, 0
        %v310 = vsel %vm257, %v288, 0
        %312 = vmatprep.subr.mxu0 %v310
        %313 = vmatpush1.msra.mxu0 %v308
        %314 = vmatprep.subr.mxu0 0.0
        %315 = vmatpush1.msra.mxu0 0.0
        %316 = vmatprep.subr.mxu0 0.0
        %317 = vmatpush1.msra.mxu0 0.0
        %318 = vmatprep.subr.mxu0 0.0
        %319 = vmatpush1.msra.mxu0 0.0
        %320 = vmatprep.subr.mxu0 0.0
        %321 = vmatpush1.msra.mxu0 0.0
        %322 = vmatprep.subr.mxu0 0.0
        %323 = vmatpush1.msra.mxu0 0.0
        %324 = vmatprep.subr.mxu0 0.0
        %325 = vmatpush1.msra.mxu0 0.0
        %326 = vmatprep.subr.mxu0 0.0
        %327 = vmatpush1.msra.mxu0 0.0
        %328 = vmatprep.subr.mxu0 0.0
        %329 = vmatpush1.msra.mxu0 0.0
        %330 = vmatprep.subr.mxu0 0.0
        %331 = vmatpush1.msra.mxu0 0.0
        %332 = vmatprep.subr.mxu0 0.0
        %333 = vmatpush1.msra.mxu0 0.0
        %334 = vmatprep.subr.mxu0 0.0
        %335 = vmatpush1.msra.mxu0 0.0
        %336 = vmatprep.subr.mxu0 0.0
        %337 = vmatpush1.msra.mxu0 0.0
        %338 = vmatprep.subr.mxu0 0.0
        %339 = vmatpush1.msra.mxu0 0.0
        %340 = vmatprep.subr.mxu0 0.0
        %341 = vmatpush1.msra.mxu0 0.0
        %342 = vmatprep.subr.mxu0 0.0
        %343 = vmatpush1.msra.mxu0 0.0
        %344 = vmatprep.subr.mxu0 0.0
        %345 = vmatpush1.msra.mxu0 0.0
        %346 = vmatprep.subr.mxu0 0.0
        %347 = vmatpush1.msra.mxu0 0.0
        %348 = vmatprep.subr.mxu0 0.0
        %349 = vmatpush1.msra.mxu0 0.0
        %350 = vmatprep.subr.mxu0 0.0
        %351 = vmatpush1.msra.mxu0 0.0
        %352 = vmatprep.subr.mxu0 0.0
        %353 = vmatpush1.msra.mxu0 0.0
        %354 = vmatprep.subr.mxu0 0.0
        %355 = vmatpush1.msra.mxu0 0.0
        %356 = vmatprep.subr.mxu0 0.0
        %357 = vmatpush1.msra.mxu0 0.0
        %358 = vmatprep.subr.mxu0 0.0
        %359 = vmatpush1.msra.mxu0 0.0
        %360 = vmatprep.subr.mxu0 0.0
        %361 = vmatpush1.msra.mxu0 0.0
        %362 = vmatprep.subr.mxu0 0.0
        %363 = vmatpush1.msra.mxu0 0.0
        %364 = vmatprep.subr.mxu0 0.0
        %365 = vmatpush1.msra.mxu0 0.0
        %366 = vmatprep.subr.mxu0 0.0
        %367 = vmatpush1.msra.mxu0 0.0
        %368 = vmatprep.subr.mxu0 0.0
        %369 = vmatpush1.msra.mxu0 0.0
        %370 = vmatprep.subr.mxu0 0.0
        %371 = vmatpush1.msra.mxu0 0.0
        %372 = vmatprep.subr.mxu0 0.0
        %373 = vmatpush1.msra.mxu0 0.0
        %374 = vmatprep.subr.mxu0 0.0
        %375 = vmatpush1.msra.mxu0 0.0
        %376 = vmatprep.mubr.f32.mxu0 0.0
        %377 = vmatmul.mubr.f32.gmra.mrb[0].mxu0 %v291
        %v378 = vpop.f32.mrb[0].mxu0
        %v379 = vadd.f32 0.0, %v378
        %v380 = vpop.f32.mrb[0].mxu0
        %v381 = vadd.f32 0.0, %v380
        %382 = vmatprep.mubr.f32.mxu0 0.0
        %383 = vmatmul.mubr.f32.gmra.mrb[0].mxu0 %v294
        %v384 = vpop.f32.mrb[0].mxu0
        %v385 = vadd.f32 0.0, %v384
        %v386 = vpop.f32.mrb[0].mxu0
        %v387 = vadd.f32 0.0, %v386
        %388 = vmatprep.mubr.f32.mxu0 0.0
        %389 = vmatmul.mubr.f32.gmra.mrb[0].mxu0 %v297
        %v390 = vpop.f32.mrb[0].mxu0
        %v391 = vadd.f32 0.0, %v390
        %v392 = vpop.f32.mrb[0].mxu0
        %v393 = vadd.f32 0.0, %v392
        %394 = vmatprep.mubr.f32.mxu0 0.0
        %395 = vmatmul.mubr.f32.gmra.mrb[0].mxu0 %v300
        %v396 = vpop.f32.mrb[0].mxu0
        %v397 = vadd.f32 0.0, %v396
        %v398 = vpop.f32.mrb[0].mxu0
        %v399 = vadd.f32 0.0, %v398
        %400 = vmatprep.mubr.f32.mxu0 0.0
        %401 = vmatmul.mubr.f32.gmra.mrb[0].mxu0 %v303
        %v402 = vpop.f32.mrb[0].mxu0
        %v403 = vadd.f32 0.0, %v402
        %v404 = vpop.f32.mrb[0].mxu0
        %v405 = vadd.f32 0.0, %v404
        %406 = vmatprep.mubr.f32.mxu0 0.0
        %407 = vmatmul.mubr.f32.gmra.mrb[0].mxu0 %v306
        %v408 = vpop.f32.mrb[0].mxu0
        %v409 = vadd.f32 0.0, %v408
        %v410 = vpop.f32.mrb[0].mxu0
        %v411 = vadd.f32 0.0, %v410
        %412 = vdwg.mxu0
        %v413 = vmax.f32 %v379, %v385
        %v414 = vrot.slane %v413, 4
        %v415 = vmax.f32 %v413, %v414
        %v416 = vrot.slane %v415, 2
        %v417 = vmax.f32 %v415, %v416
        %v418 = vrot.slane %v417, 1
        %v419 = vmax.f32 %v417, %v418
        %v420 = vmax.f32 %v381, %v387
        %v421 = vrot.slane %v420, 4
        %v422 = vmax.f32 %v420, %v421
        %v423 = vrot.slane %v422, 2
        %v424 = vmax.f32 %v422, %v423
        %v425 = vrot.slane %v424, 1
        %v426 = vmax.f32 %v424, %v425
        %v427 = vsub.f32 %v379, %v419
        %v428 = vsub.f32 %v381, %v426
        %v429 = vsub.f32 %v385, %v419
        %v430 = vsub.f32 %v387, %v426
        %v431 = vmul.f32 %v427, 1.442695
        %v432 = vpow.pop %v431
        %v433 = vmul.f32 %v428, 1.442695
        %v434 = vpow.pop %v433
        %v435 = vmul.f32 %v429, 1.442695
        %v436 = vpow.pop %v435
        %v437 = vmul.f32 %v430, 1.442695
        %v438 = vpow.pop %v437
        %vm439 = vcmask 130048
        %v441 = vsel %vm439, %v251, 0
        %v444 = vsel %vm439, %v252, 0
        %446 = vmatprep.subr.mxu0 %v434
        %447 = vmatpush1.msra.mxu0 %v432
        %448 = vmatprep.subr.mxu0 %v438
        %449 = vmatpush1.msra.mxu0 %v436
        %450 = vmatprep.subr.mxu0 0.0
        %451 = vmatpush1.msra.mxu0 0.0
        %452 = vmatprep.subr.mxu0 0.0
        %453 = vmatpush1.msra.mxu0 0.0
        %454 = vmatprep.subr.mxu0 0.0
        %455 = vmatpush1.msra.mxu0 0.0
        %456 = vmatprep.subr.mxu0 0.0
        %457 = vmatpush1.msra.mxu0 0.0
        %458 = vmatprep.subr.mxu0 0.0
        %459 = vmatpush1.msra.mxu0 0.0
        %460 = vmatprep.subr.mxu0 0.0
        %461 = vmatpush1.msra.mxu0 0.0
        %462 = vmatprep.subr.mxu0 0.0
        %463 = vmatpush1.msra.mxu0 0.0
        %464 = vmatprep.subr.mxu0 0.0
        %465 = vmatpush1.msra.mxu0 0.0
        %466 = vmatprep.subr.mxu0 0.0
        %467 = vmatpush1.msra.mxu0 0.0
        %468 = vmatprep.subr.mxu0 0.0
        %469 = vmatpush1.msra.mxu0 0.0
        %470 = vmatprep.subr.mxu0 0.0
        %471 = vmatpush1.msra.mxu0 0.0
        %472 = vmatprep.subr.mxu0 0.0
        %473 = vmatpush1.msra.mxu0 0.0
        %474 = vmatprep.subr.mxu0 0.0
        %475 = vmatpush1.msra.mxu0 0.0
        %476 = vmatprep.subr.mxu0 0.0
        %477 = vmatpush1.msra.mxu0 0.0
        %478 = vmatprep.subr.mxu0 0.0
        %479 = vmatpush1.msra.mxu0 0.0
        %480 = vmatprep.subr.mxu0 0.0
        %481 = vmatpush1.msra.mxu0 0.0
        %482 = vmatprep.subr.mxu0 0.0
        %483 = vmatpush1.msra.mxu0 0.0
        %484 = vmatprep.subr.mxu0 0.0
        %485 = vmatpush1.msra.mxu0 0.0
        %486 = vmatprep.subr.mxu0 0.0
        %487 = vmatpush1.msra.mxu0 0.0
        %488 = vmatprep.subr.mxu0 0.0
        %489 = vmatpush1.msra.mxu0 0.0
        %490 = vmatprep.subr.mxu0 0.0
        %491 = vmatpush1.msra.mxu0 0.0
        %492 = vmatprep.subr.mxu0 0.0
        %493 = vmatpush1.msra.mxu0 0.0
        %494 = vmatprep.subr.mxu0 0.0
        %495 = vmatpush1.msra.mxu0 0.0
        %496 = vmatprep.subr.mxu0 0.0
        %497 = vmatpush1.msra.mxu0 0.0
        %498 = vmatprep.subr.mxu0 0.0
        %499 = vmatpush1.msra.mxu0 0.0
        %500 = vmatprep.subr.mxu0 0.0
        %501 = vmatpush1.msra.mxu0 0.0
        %502 = vmatprep.subr.mxu0 0.0
        %503 = vmatpush1.msra.mxu0 0.0
        %504 = vmatprep.subr.mxu0 0.0
        %505 = vmatpush1.msra.mxu0 0.0
        %506 = vmatprep.subr.mxu0 0.0
        %507 = vmatpush1.msra.mxu0 0.0
        %508 = vmatprep.subr.mxu0 0.0
        %509 = vmatpush1.msra.mxu0 0.0
        %510 = vmatprep.mubr.f32.mxu0 0.0
        %511 = vmatmul.mubr.f32.gmra.mrb[0].mxu0 %v441
        %v512 = vpop.f32.mrb[0].mxu0
        %v513 = vadd.f32 0.0, %v512
        %v514 = vpop.f32.mrb[0].mxu0
        %v515 = vadd.f32 0.0, %v514
        %516 = vmatprep.mubr.f32.mxu0 0.0
        %517 = vmatmul.mubr.f32.gmra.mrb[0].mxu0 %v444
        %v518 = vpop.f32.mrb[0].mxu0
        %v519 = vadd.f32 0.0, %v518
        %v520 = vpop.f32.mrb[0].mxu0
        %v521 = vadd.f32 0.0, %v520
        %522 = vdwg.mxu0
        %v523 = vrcp.pop %v513
        %v524 = vrcp.pop %v515
        %v525 = vrcp.pop %v519
        %v526 = vrcp.pop %v521
        %v527 = vmul.f32 %v432, %v523
        %v528 = vmul.f32 %v434, %v524
        %v529 = vmul.f32 %v436, %v525
        %v530 = vmul.f32 %v438, %v526
        %v531 = vmax.f32 %v391, %v393
        %532 = vmax.xlane.f32.xlu0 %v531
        %v533 = vpop.xlane.xlu0 %532
        %v534 = vmax.f32 %v397, %v399
        %535 = vmax.xlane.f32.xlu0 %v534
        %v536 = vpop.xlane.xlu0 %535
        %v537 = vsub.f32 %v391, %v533
        %v538 = vsub.f32 %v393, %v533
        %v539 = vsub.f32 %v397, %v536
        %v540 = vsub.f32 %v399, %v536
        %v541 = vmul.f32 %v537, 1.442695
        %v542 = vpow.pop %v541
        %v543 = vmul.f32 %v538, 1.442695
        %v544 = vpow.pop %v543
        %v545 = vmul.f32 %v539, 1.442695
        %v546 = vpow.pop %v545
        %v547 = vmul.f32 %v540, 1.442695
        %v548 = vpow.pop %v547
        %v549 = vadd.f32 %v542, %v544
        %550 = vadd.xlane.f32.xlu0 %v549
        %v551 = vpop.xlane.xlu0 %550
        %v552 = vadd.f32 %v546, %v548
        %553 = vadd.xlane.f32.xlu0 %v552
        %v554 = vpop.xlane.xlu0 %553
        %v555 = vrcp.pop %v551
        %v556 = vrcp.pop %v554
        %v557 = vmul.f32 %v542, %v555
        %v558 = vmul.f32 %v544, %v555
        %v559 = vmul.f32 %v546, %v556
        %v560 = vmul.f32 %v548, %v556
        %561 = vmatprep.subr.mxu0 %v405
        %562 = vmatpush1.xpose.msra.mxu0 %v403
        %563 = vmatprep.subr.mxu0 %v411
        %564 = vmatpush1.xpose.msra.mxu0 %v409
        %565 = vmatprep.subr.mxu0 0.0
        %566 = vmatpush1.xpose.msra.mxu0 0.0
        %567 = vmatprep.subr.mxu0 0.0
        %568 = vmatpush1.xpose.msra.mxu0 0.0
        %569 = vmatprep.subr.mxu0 0.0
        %570 = vmatpush1.xpose.msra.mxu0 0.0
        %571 = vmatprep.subr.mxu0 0.0
        %572 = vmatpush1.xpose.msra.mxu0 0.0
        %573 = vmatprep.subr.mxu0 0.0
        %574 = vmatpush1.xpose.msra.mxu0 0.0
        %575 = vmatprep.subr.mxu0 0.0
        %576 = vmatpush1.xpose.msra.mxu0 0.0
        %577 = vmatprep.subr.mxu0 0.0
        %578 = vmatpush1.xpose.msra.mxu0 0.0
        %579 = vmatprep.subr.mxu0 0.0
        %580 = vmatpush1.xpose.msra.mxu0 0.0
        %581 = vmatprep.subr.mxu0 0.0
        %582 = vmatpush1.xpose.msra.mxu0 0.0
        %583 = vmatprep.subr.mxu0 0.0
        %584 = vmatpush1.xpose.msra.mxu0 0.0
        %585 = vmatprep.subr.mxu0 0.0
        %586 = vmatpush1.xpose.msra.mxu0 0.0
        %587 = vmatprep.subr.mxu0 0.0
        %588 = vmatpush1.xpose.msra.mxu0 0.0
        %589 = vmatprep.subr.mxu0 0.0
        %590 = vmatpush1.xpose.msra.mxu0 0.0
        %591 = vmatprep.subr.mxu0 0.0
        %592 = vmatpush1.xpose.msra.mxu0 0.0
        %593 = vmatprep.subr.mxu0 0.0
        %594 = vmatpush1.xpose.msra.mxu0 0.0
        %595 = vmatprep.subr.mxu0 0.0
        %596 = vmatpush1.xpose.msra.mxu0 0.0
        %597 = vmatprep.subr.mxu0 0.0
        %598 = vmatpush1.xpose.msra.mxu0 0.0
        %599 = vmatprep.subr.mxu0 0.0
        %600 = vmatpush1.xpose.msra.mxu0 0.0
        %601 = vmatprep.subr.mxu0 0.0
        %602 = vmatpush1.xpose.msra.mxu0 0.0
        %603 = vmatprep.subr.mxu0 0.0
        %604 = vmatpush1.xpose.msra.mxu0 0.0
        %605 = vmatprep.subr.mxu0 0.0
        %606 = vmatpush1.xpose.msra.mxu0 0.0
        %607 = vmatprep.subr.mxu0 0.0
        %608 = vmatpush1.xpose.msra.mxu0 0.0
        %609 = vmatprep.subr.mxu0 0.0
        %610 = vmatpush1.xpose.msra.mxu0 0.0
        %611 = vmatprep.subr.mxu0 0.0
        %612 = vmatpush1.xpose.msra.mxu0 0.0
        %613 = vmatprep.subr.mxu0 0.0
        %614 = vmatpush1.xpose.msra.mxu0 0.0
        %615 = vmatprep.subr.mxu0 0.0
        %616 = vmatpush1.xpose.msra.mxu0 0.0
        %617 = vmatprep.subr.mxu0 0.0
        %618 = vmatpush1.xpose.msra.mxu0 0.0
        %619 = vmatprep.subr.mxu0 0.0
        %620 = vmatpush1.xpose.msra.mxu0 0.0
        %621 = vmatprep.subr.mxu0 0.0
        %622 = vmatpush1.xpose.msra.mxu0 0.0
        %623 = vmatprep.subr.mxu0 0.0
        %624 = vmatpush1.xpose.msra.mxu0 0.0
        %625 = vmatprep.mubr.f32.mxu0 %v558
        %626 = vmatmul.mubr.f32.gmra.mrb[0].mxu0 %v557
        %v627 = vpop.f32.mrb[0].mxu0
        %v628 = vadd.f32 0.0, %v627
        %v629 = vpop.f32.mrb[0].mxu0
        %630 = vmatprep.mubr.f32.mxu0 %v560
        %631 = vmatmul.mubr.f32.gmra.mrb[0].mxu0 %v559
        %v632 = vpop.f32.mrb[0].mxu0
        %v633 = vadd.f32 0.0, %v632
        %v634 = vpop.f32.mrb[0].mxu0
        %635 = vdwg.mxu0
        %v636 = vmul.f32 %v628, %v251
        %v637 = vmul.f32 %v633, %v252
        %v638 = vld [vmem:[%s3] sm:$0xf]
        %v640 = vsel %vm439, %v638, 0
        %v643 = vsel %vm439, %v636, 0
        %v646 = vsel %vm439, %v637, 0
        %648 = vmatprep.subr.mxu0 0.0
        %649 = vmatpush1.xpose.msra.mxu0 %v643
        %650 = vmatprep.subr.mxu0 0.0
        %651 = vmatpush1.xpose.msra.mxu0 %v646
        %652 = vmatprep.subr.mxu0 0.0
        %653 = vmatpush1.xpose.msra.mxu0 0.0
        %654 = vmatprep.subr.mxu0 0.0
        %655 = vmatpush1.xpose.msra.mxu0 0.0
        %656 = vmatprep.subr.mxu0 0.0
        %657 = vmatpush1.xpose.msra.mxu0 0.0
        %658 = vmatprep.subr.mxu0 0.0
        %659 = vmatpush1.xpose.msra.mxu0 0.0
        %660 = vmatprep.subr.mxu0 0.0
        %661 = vmatpush1.xpose.msra.mxu0 0.0
        %662 = vmatprep.subr.mxu0 0.0
        %663 = vmatpush1.xpose.msra.mxu0 0.0
        %664 = vmatprep.subr.mxu0 0.0
        %665 = vmatpush1.xpose.msra.mxu0 0.0
        %666 = vmatprep.subr.mxu0 0.0
        %667 = vmatpush1.xpose.msra.mxu0 0.0
        %668 = vmatprep.subr.mxu0 0.0
        %669 = vmatpush1.xpose.msra.mxu0 0.0
        %670 = vmatprep.subr.mxu0 0.0
        %671 = vmatpush1.xpose.msra.mxu0 0.0
        %672 = vmatprep.subr.mxu0 0.0
        %673 = vmatpush1.xpose.msra.mxu0 0.0
        %674 = vmatprep.subr.mxu0 0.0
        %675 = vmatpush1.xpose.msra.mxu0 0.0
        %676 = vmatprep.subr.mxu0 0.0
        %677 = vmatpush1.xpose.msra.mxu0 0.0
        %678 = vmatprep.subr.mxu0 0.0
        %679 = vmatpush1.xpose.msra.mxu0 0.0
        %680 = vmatprep.subr.mxu0 0.0
        %681 = vmatpush1.xpose.msra.mxu0 0.0
        %682 = vmatprep.subr.mxu0 0.0
        %683 = vmatpush1.xpose.msra.mxu0 0.0
        %684 = vmatprep.subr.mxu0 0.0
        %685 = vmatpush1.xpose.msra.mxu0 0.0
        %686 = vmatprep.subr.mxu0 0.0
        %687 = vmatpush1.xpose.msra.mxu0 0.0
        %688 = vmatprep.subr.mxu0 0.0
        %689 = vmatpush1.xpose.msra.mxu0 0.0
        %690 = vmatprep.subr.mxu0 0.0
        %691 = vmatpush1.xpose.msra.mxu0 0.0
        %692 = vmatprep.subr.mxu0 0.0
        %693 = vmatpush1.xpose.msra.mxu0 0.0
        %694 = vmatprep.subr.mxu0 0.0
        %695 = vmatpush1.xpose.msra.mxu0 0.0
        %696 = vmatprep.subr.mxu0 0.0
        %697 = vmatpush1.xpose.msra.mxu0 0.0
        %698 = vmatprep.subr.mxu0 0.0
        %699 = vmatpush1.xpose.msra.mxu0 0.0
        %700 = vmatprep.subr.mxu0 0.0
        %701 = vmatpush1.xpose.msra.mxu0 0.0
        %702 = vmatprep.subr.mxu0 0.0
        %703 = vmatpush1.xpose.msra.mxu0 0.0
        %704 = vmatprep.subr.mxu0 0.0
        %705 = vmatpush1.xpose.msra.mxu0 0.0
        %706 = vmatprep.subr.mxu0 0.0
        %707 = vmatpush1.xpose.msra.mxu0 0.0
        %708 = vmatprep.subr.mxu0 0.0
        %709 = vmatpush1.xpose.msra.mxu0 0.0
        %710 = vmatprep.subr.mxu0 0.0
        %711 = vmatpush1.xpose.msra.mxu0 0.0
        %712 = vmatprep.mubr.f32.mxu0 0.0
        %713 = vmatmul.mubr.f32.gmra.mrb[0].mxu0 %v640
        %v714 = vpop.f32.mrb[0].mxu0
        %v715 = vadd.f32 0.0, %v714
        %v716 = vpop.f32.mrb[0].mxu0
        %717 = vdwg.mxu0
        %v718 = vld [vmem:[%s4] sm:$0xf]
        %720 = vset.pattern.permute.xlu0 0
        %721 = vperm.xlu0 %720, %v718
        %v722 = vpop.permute.xlu0 %721
        %v725 = vsel %vm439, %v715, 0
        %727 = vmatprep.subr.mxu0 %v528
        %728 = vmatpush1.msra.mxu0 %v527
        %729 = vmatprep.subr.mxu0 %v530
        %730 = vmatpush1.msra.mxu0 %v529
        %731 = vmatprep.subr.mxu0 0.0
        %732 = vmatpush1.msra.mxu0 0.0
        %733 = vmatprep.subr.mxu0 0.0
        %734 = vmatpush1.msra.mxu0 0.0
        %735 = vmatprep.subr.mxu0 0.0
        %736 = vmatpush1.msra.mxu0 0.0
        %737 = vmatprep.subr.mxu0 0.0
        %738 = vmatpush1.msra.mxu0 0.0
        %739 = vmatprep.subr.mxu0 0.0
        %740 = vmatpush1.msra.mxu0 0.0
        %741 = vmatprep.subr.mxu0 0.0
        %742 = vmatpush1.msra.mxu0 0.0
        %743 = vmatprep.subr.mxu0 0.0
        %744 = vmatpush1.msra.mxu0 0.0
        %745 = vmatprep.subr.mxu0 0.0
        %746 = vmatpush1.msra.mxu0 0.0
        %747 = vmatprep.subr.mxu0 0.0
        %748 = vmatpush1.msra.mxu0 0.0
        %749 = vmatprep.subr.mxu0 0.0
        %750 = vmatpush1.msra.mxu0 0.0
        %751 = vmatprep.subr.mxu0 0.0
        %752 = vmatpush1.msra.mxu0 0.0
        %753 = vmatprep.subr.mxu0 0.0
        %754 = vmatpush1.msra.mxu0 0.0
        %755 = vmatprep.subr.mxu0 0.0
        %756 = vmatpush1.msra.mxu0 0.0
        %757 = vmatprep.subr.mxu0 0.0
        %758 = vmatpush1.msra.mxu0 0.0
        %759 = vmatprep.subr.mxu0 0.0
        %760 = vmatpush1.msra.mxu0 0.0
        %761 = vmatprep.subr.mxu0 0.0
        %762 = vmatpush1.msra.mxu0 0.0
        %763 = vmatprep.subr.mxu0 0.0
        %764 = vmatpush1.msra.mxu0 0.0
        %765 = vmatprep.subr.mxu0 0.0
        %766 = vmatpush1.msra.mxu0 0.0
        %767 = vmatprep.subr.mxu0 0.0
        %768 = vmatpush1.msra.mxu0 0.0
        %769 = vmatprep.subr.mxu0 0.0
        %770 = vmatpush1.msra.mxu0 0.0
        %771 = vmatprep.subr.mxu0 0.0
        %772 = vmatpush1.msra.mxu0 0.0
        %773 = vmatprep.subr.mxu0 0.0
        %774 = vmatpush1.msra.mxu0 0.0
        %775 = vmatprep.subr.mxu0 0.0
        %776 = vmatpush1.msra.mxu0 0.0
        %777 = vmatprep.subr.mxu0 0.0
        %778 = vmatpush1.msra.mxu0 0.0
        %779 = vmatprep.subr.mxu0 0.0
        %780 = vmatpush1.msra.mxu0 0.0
        %781 = vmatprep.subr.mxu0 0.0
        %782 = vmatpush1.msra.mxu0 0.0
        %783 = vmatprep.subr.mxu0 0.0
        %784 = vmatpush1.msra.mxu0 0.0
        %785 = vmatprep.subr.mxu0 0.0
        %786 = vmatpush1.msra.mxu0 0.0
        %787 = vmatprep.subr.mxu0 0.0
        %788 = vmatpush1.msra.mxu0 0.0
        %789 = vmatprep.subr.mxu0 0.0
        %790 = vmatpush1.msra.mxu0 0.0
        %791 = vmatprep.mubr.f32.mxu0 0.0
        %792 = vmatmul.mubr.f32.gmra.mrb[0].mxu0 %v725
        %v793 = vpop.f32.mrb[0].mxu0
        %v794 = vadd.f32 %v722, %v793
        %v795 = vpop.f32.mrb[0].mxu0
        %v796 = vadd.f32 %v722, %v795
        %797 = vdwg.mxu0
        %v798 = vmul.f32 %v794, %v794
        %v799 = vmul.f32 %v796, %v796
        %v800 = vsel %vm257, %v798, 0.0
        %v801 = vrot.slane %v800, 4
        %v802 = vadd.f32 %v800, %v801
        %v803 = vrot.slane %v802, 2
        %v804 = vadd.f32 %v802, %v803
        %v805 = vrot.slane %v804, 1
        %v806 = vadd.f32 %v804, %v805
        %v807 = vsel %vm257, %v799, 0.0
        %v808 = vrot.slane %v807, 4
        %v809 = vadd.f32 %v807, %v808
        %v810 = vrot.slane %v809, 2
        %v811 = vadd.f32 %v809, %v810
        %v812 = vrot.slane %v811, 1
        %v813 = vadd.f32 %v811, %v812
        %v814 = vmax.f32 %v806, 1e-24
        %v815 = vmax.f32 %v813, 1e-24
        %v816 = vrsqrt.pop %v814
        %v817 = vrsqrt.pop %v815
        %v818 = vmul.f32 %v794, %v816
        %v819 = vmul.f32 %v796, %v817
        %v820 = vld [vmem:[%s5] sm:$0xf]
        %822 = vset.pattern.permute.xlu0 0
        %823 = vperm.xlu0 %822, %v820
        %v824 = vpop.permute.xlu0 %823
        %v826 = vmul.f32 %v818, %v824
        %v827 = vmul.f32 %v819, %v824
        %v830 = vcombine.low %v826, %v827
        %832 = vst [vmem:[%s244] sm:$0xff] %v830
        %s833 = sand.u32 %s159, 1
        %s834 = scalar_lea.sflag [#allocation3], %s833
        %s835 = sand.u32 %s159, 1
        %s836 = smul.addr %s835, 8
        %s837 = scalar_lea.vmem [#allocation2], %s836
        // Predicated region
        $region45: #{tpu_custom_call.1} parent=43 // pred_check
          %p838 = pneg %p169
        $region46: #{tpu_custom_call.1} parent=43 // pred_check_branch
          %840 = sbr.rel (%p838) target = $region48
        $region47: #{tpu_custom_call.1} parent=43 // pred_region
          %s842 = ssub.s32 128, 128
          %843 = vsyncadd %s834, %s842
          %s844 = smul.addr %s20, 2
          %s845 = smul.addr %s844, 64
          %s846 = scalar_lea.hbm %s6, %s845
          %s848 = sshll.u32 %s837, 4
          %s849 = int_to_ptr.vmem [resolvable:$true] %s848
          %851 = dma.vmem_to_hbm [thread:$0]  %s849, 128, %s846, %s834
        $region48: #{tpu_custom_call.1} parent=43 // pred_fallthru
          _
      $region44: #{tpu_custom_call.1} parent=5 // pred_fallthru
        _
      %p852 = scmp.le.s32.totalorder 2, %s15
      // Predicated region
      $region49: #{tpu_custom_call.1} parent=5 // pred_check
        %p853 = pneg %p852
      $region50: #{tpu_custom_call.1} parent=5 // pred_check_branch
        %855 = sbr.rel (%p853) target = $region52
      $region51: #{tpu_custom_call.1} parent=5 // pred_region
        %s856 = ssub.s32 %s15, 2
        // Predicated region
        $region53: #{tpu_custom_call.1} parent=51 // pred_check
          %p857 = pneg %p175
        $region54: #{tpu_custom_call.1} parent=51 // pred_check_branch
          %859 = sbr.rel (%p857) target = $region56
        $region55: #{tpu_custom_call.1} parent=51 // pred_region
          %s860 = sand.u32 %s160, 1
          %s861 = scalar_lea.sflag [#allocation3], %s860
          %s862 = sand.u32 %s160, 1
          %s863 = smul.addr %s862, 8
          %s864 = scalar_lea.vmem [#allocation2], %s863
          %865 = dma.done %s861, 128
        $region56: #{tpu_custom_call.1} parent=51 // pred_fallthru
          _
      $region52: #{tpu_custom_call.1} parent=5 // pred_fallthru
        _
    $region6: #{tpu_custom_call.1} parent=1 // loop_footer
      %s19 = sadd.s32 1, %s15
    $region7: #{tpu_custom_call.1} parent=1 // loop_footer_branch
      %14 = sbr.rel target = $region3
    $region8: #{tpu_custom_call.1} parent=1 // loop_exit
      _
    %866 = vsyncpa [#allocation3], 1
    %s867 = scalar_lea.sflag [#allocation3], 1
    %868 = vsyncpa %s867, 1

</llo_original>
